<compile_context>
chip_gen: v7x
topology: tpu7x:2x2x1
jax: 0.10.0
libtpu: 0.0.40
codegen_flags: <defaults>
</compile_context>

<pallas_src>
import jax
import jax.numpy as jnp
from jax.experimental import pallas as pl
from jax.experimental.pallas import tpu as pltpu


# ----------------------------------------------------------------------------
# Single-step kernel (exact analogue of EncoderRNN_Forward.forward)
# ----------------------------------------------------------------------------
def _lstm_cell_kernel(x_ref, h_ref, c_ref, w_ref, b_ref, out_ref):
    # x_ref/h_ref/c_ref : (1, D)   w_ref : (2D, 4D)   b_ref : (1, 4D)
    # out_ref           : (1, 2D)  -> [ht | ct] packed along lanes
    D = c_ref.shape[-1]

    # Split matmul replaces cat(x, h) @ W  (no host-side concat, no extra copy).
    post = (jnp.dot(x_ref[...], w_ref[:D, :], preferred_element_type=jnp.float32)
            + jnp.dot(h_ref[...], w_ref[D:, :], preferred_element_type=jnp.float32)
            + b_ref[...])                                        # (1, 4D)

    # One wide sigmoid (3D lanes) + one tanh instead of three narrow sigmoids.
    sig = jax.nn.sigmoid(post[:, :3 * D])
    gate_input = sig[:, 0 * D:1 * D]
    gate_forget = sig[:, 1 * D:2 * D]
    gate_output = sig[:, 2 * D:3 * D]
    gate_pre_c = jnp.tanh(post[:, 3 * D:4 * D])

    ct = gate_forget * c_ref[...] + gate_input * gate_pre_c
    ht = gate_output * jnp.tanh(ct)

    # One packed store instead of two narrow masked stores.
    out_ref[...] = jnp.concatenate([ht, ct], axis=-1)            # (1, 2D)


def encoder_rnn_forward(xt, htm1, ctm1, W_enc_forward, b_enc_forward):
    """One LSTM-cell encoder step (matches the PyTorch module's forward).

    xt, htm1, ctm1 : (1, 1, D) float32
    W_enc_forward  : (2D, 4D)  float32
    b_enc_forward  : (4D,)     float32
    returns (ht, ct) each (1, 1, D) float32

    NOTE: this path is launch-overhead bound by construction; multi-step use
    should go through encoder_rnn_forward_sequence.
    """
    D = xt.shape[-1]
    x_row = xt.reshape(1, D)
    h_row = htm1.reshape(1, D)
    c_row = ctm1.reshape(1, D)
    b_row = b_enc_forward.reshape(1, 4 * D)

    vmem = pl.BlockSpec(memory_space=pltpu.MemorySpace.VMEM)
    packed = pl.pallas_call(
        _lstm_cell_kernel,
        out_shape=jax.ShapeDtypeStruct((1, 2 * D), jnp.float32),
        in_specs=[vmem, vmem, vmem, vmem, vmem],
        out_specs=vmem,
    )(x_row, h_row, c_row, W_enc_forward, b_row)

    ht = packed[:, :D].reshape(1, 1, D)
    ct = packed[:, D:].reshape(1, 1, D)
    return ht, ct


# ----------------------------------------------------------------------------
# Fused time-loop kernel: all T steps in ONE gridless pallas_call
# ----------------------------------------------------------------------------
def _lstm_seq_kernel(xs_ref, w_ref, b_ref, h0_ref, c0_ref,
                     h_all_ref, hc_final_ref):
    # xs_ref : (T, D)  whole sequence resident in VMEM
    # w_ref  : (2D, 4D)   b_ref : (1, 4D)   h0_ref/c0_ref : (1, D)
    # h_all_ref : (T, D)  hc_final_ref : (1, 2D)
    D = c0_ref.shape[-1]
    T = xs_ref.shape[0]

    w_x = w_ref[:D, :]                                           # (D, 4D)
    w_h = w_ref[D:, :]                                           # (D, 4D)

    # Hoisted input projection for ALL timesteps: one (T,D)@(D,4D) matmul,
    # removes T-1 MXU pushes and T bias adds from the serial recurrence.
    post_x = (jnp.dot(xs_ref[...], w_x, preferred_element_type=jnp.float32)
              + b_ref[...])                                      # (T, 4D)

    # h/c carried as values (vregs) across the fully-unrolled time loop.
    h = h0_ref[...]                                              # (1, D)
    c = c0_ref[...]                                              # (1, D)
    hs = []
    for t in range(T):                                           # static, tiny T
        post = post_x[t:t + 1, :] + jnp.dot(
            h, w_h, preferred_element_type=jnp.float32)          # (1, 4D)

        sig = jax.nn.sigmoid(post[:, :3 * D])                    # one EUP launch
        gate_input = sig[:, 0 * D:1 * D]
        gate_forget = sig[:, 1 * D:2 * D]
        gate_output = sig[:, 2 * D:3 * D]
        gate_pre_c = jnp.tanh(post[:, 3 * D:4 * D])

        c = gate_forget * c + gate_input * gate_pre_c
        h = gate_output * jnp.tanh(c)
        hs.append(h)

    # Single dense flush of all hidden states (no per-step masked stores).
    h_all_ref[...] = jnp.concatenate(hs, axis=0)                 # (T, D)
    hc_final_ref[...] = jnp.concatenate([h, c], axis=-1)         # (1, 2D)


def encoder_rnn_forward_sequence(xs, h0, c0, W_enc_forward, b_enc_forward):
    """Run T LSTM-cell steps in ONE gridless pallas_call.

    xs : (T, D) float32      h0, c0 : (1, 1, D) float32
    W_enc_forward : (2D, 4D) float32,  b_enc_forward : (4D,) float32
    returns (h_all (T, 1, 1, D), ht (1, 1, D), ct (1, 1, D))
    """
    T, D = xs.shape
    h_row = h0.reshape(1, D)
    c_row = c0.reshape(1, D)
    b_row = b_enc_forward.reshape(1, 4 * D)

    vmem = pl.BlockSpec(memory_space=pltpu.MemorySpace.VMEM)
    h_all, hc_final = pl.pallas_call(
        _lstm_seq_kernel,
        out_shape=(
            jax.ShapeDtypeStruct((T, D), jnp.float32),           # all h_t
            jax.ShapeDtypeStruct((1, 2 * D), jnp.float32),       # [h_T | c_T]
        ),
        in_specs=[vmem, vmem, vmem, vmem, vmem],
        out_specs=(vmem, vmem),
    )(xs, W_enc_forward, b_row, h_row, c_row)

    ht = hc_final[:, :D].reshape(1, 1, D)
    ct = hc_final[:, D:].reshape(1, 1, D)
    return h_all.reshape(T, 1, 1, D), ht, ct


# ----------------------------------------------------------------------------
# Pure-JAX references
# ----------------------------------------------------------------------------
def _reference_step(xt, htm1, ctm1, W, b):
    D = xt.shape[-1]
    inp = jnp.concatenate([xt.reshape(D), htm1.reshape(D)])
    post = b + inp @ W
    i = jax.nn.sigmoid(post[:D])
    f = jax.nn.sigmoid(post[D:2 * D])
    o = jax.nn.sigmoid(post[2 * D:3 * D])
    g = jnp.tanh(post[3 * D:])
    ct = f * ctm1.reshape(D) + i * g
    ht = o * jnp.tanh(ct)
    return ht.reshape(1, 1, D), ct.reshape(1, 1, D)


def _reference_sequence(xs, h0, c0, W, b):
    def step(carry, x_t):
        h, c = carry
        ht, ct = _reference_step(x_t.reshape(1, 1, -1), h, c, W, b)
        return (ht, ct), ht
    (ht, ct), h_all = jax.lax.scan(step, (h0, c0), xs)
    return h_all.reshape(xs.shape[0], 1, 1, xs.shape[-1]), ht, ct


if __name__ == "__main__":
    dim_model = 32                      # model_settings['dim_model']
    seq_len = 8

    key = jax.random.PRNGKey(0)
    k_x, k_h, k_c, k_w, k_seq = jax.random.split(key, 5)

    xt = jax.random.normal(k_x, (1, 1, dim_model), dtype=jnp.float32)
    htm1 = jax.random.normal(k_h, (1, 1, dim_model), dtype=jnp.float32)
    ctm1 = jax.random.normal(k_c, (1, 1, dim_model), dtype=jnp.float32)
    xs = jax.random.normal(k_seq, (seq_len, dim_model), dtype=jnp.float32)

    # Deterministic parameters (shapes from __init__):
    #   W_enc_forward : (2*dim_model, 4*dim_model), b_enc_forward : zeros(4*dim_model)
    W_enc_forward = 0.1 * jax.random.normal(
        k_w, (2 * dim_model, 4 * dim_model), dtype=jnp.float32)
    b_enc_forward = jnp.zeros((4 * dim_model,), dtype=jnp.float32)

    # --- single step (module-exact forward) ---
    ht, ct = encoder_rnn_forward(xt, htm1, ctm1, W_enc_forward, b_enc_forward)
    jax.block_until_ready((ht, ct))
    ht_ref, ct_ref = _reference_step(xt, htm1, ctm1, W_enc_forward, b_enc_forward)
    assert jnp.allclose(ht, ht_ref, atol=1e-5), "single-step ht mismatch"
    assert jnp.allclose(ct, ct_ref, atol=1e-5), "single-step ct mismatch"

    # --- fused sequence (all T steps in one gridless pallas_call) ---
    h_all, ht_T, ct_T = encoder_rnn_forward_sequence(
        xs, htm1, ctm1, W_enc_forward, b_enc_forward)
    jax.block_until_ready((h_all, ht_T, ct_T))
    h_all_ref, ht_T_ref, ct_T_ref = _reference_sequence(
        xs, htm1, ctm1, W_enc_forward, b_enc_forward)
    assert jnp.allclose(h_all, h_all_ref, atol=1e-4), "sequence h_all mismatch"
    assert jnp.allclose(ht_T, ht_T_ref, atol=1e-4), "sequence ht mismatch"
    assert jnp.allclose(ct_T, ct_T_ref, atol=1e-4), "sequence ct mismatch"

    print("KERNEL_OK")
</pallas_src>

<mosaic_0001>
module attributes {stable_mosaic.version = 11 : i64} {
  func.func @_lstm_cell_kernel(%arg0: memref<1x32xf32, #tpu.memory_space<vmem>>, %arg1: memref<1x32xf32, #tpu.memory_space<vmem>>, %arg2: memref<1x32xf32, #tpu.memory_space<vmem>>, %arg3: memref<64x128xf32, #tpu.memory_space<vmem>>, %arg4: memref<1x128xf32, #tpu.memory_space<vmem>>, %arg5: memref<1x64xf32, #tpu.memory_space<vmem>>) attributes {dimension_semantics = [], scalar_prefetch = 0 : i64, scratch_operands = 0 : i64, tpu.core_type = #tpu.core_type<tc>} {
    %c0 = arith.constant 0 : index
    %c0_0 = arith.constant 0 : index
    %0 = vector.load %arg0[%c0, %c0_0] : memref<1x32xf32, #tpu.memory_space<vmem>>, vector<1x32xf32>
    %c0_1 = arith.constant 0 : index
    %c0_2 = arith.constant 0 : index
    %1 = vector.load %arg3[%c0_1, %c0_2] : memref<64x128xf32, #tpu.memory_space<vmem>>, vector<32x128xf32>
    %cst = arith.constant dense<0.000000e+00> : vector<1x128xf32>
    %2 = tpu.matmul %0, %1, %cst {dimension_numbers = #tpu.dot_dimension_numbers<[1], [0], [0], [1], [0, 0, 1, 1], [], []>} : vector<1x32xf32>, vector<32x128xf32>, vector<1x128xf32> -> vector<1x128xf32>
    %c0_3 = arith.constant 0 : index
    %c0_4 = arith.constant 0 : index
    %3 = vector.load %arg1[%c0_3, %c0_4] : memref<1x32xf32, #tpu.memory_space<vmem>>, vector<1x32xf32>
    %c32 = arith.constant 32 : index
    %c0_5 = arith.constant 0 : index
    %4 = vector.load %arg3[%c32, %c0_5] : memref<64x128xf32, #tpu.memory_space<vmem>>, vector<32x128xf32>
    %cst_6 = arith.constant dense<0.000000e+00> : vector<1x128xf32>
    %5 = tpu.matmul %3, %4, %cst_6 {dimension_numbers = #tpu.dot_dimension_numbers<[1], [0], [0], [1], [0, 0, 1, 1], [], []>} : vector<1x32xf32>, vector<32x128xf32>, vector<1x128xf32> -> vector<1x128xf32>
    %6 = arith.addf %2, %5 : vector<1x128xf32>
    %c0_7 = arith.constant 0 : index
    %c0_8 = arith.constant 0 : index
    %7 = vector.load %arg4[%c0_7, %c0_8] : memref<1x128xf32, #tpu.memory_space<vmem>>, vector<1x128xf32>
    %8 = arith.addf %6, %7 : vector<1x128xf32>
    %9 = vector.extract_strided_slice %8 {offsets = [0, 0], sizes = [1, 96], strides = [1, 1]} : vector<1x128xf32> to vector<1x96xf32>
    %10 = arith.negf %9 : vector<1x96xf32>
    %11 = math.exp %10 : vector<1x96xf32>
    %cst_9 = arith.constant 1.000000e+00 : f32
    %12 = vector.broadcast %cst_9 : f32 to vector<1x96xf32>
    %13 = arith.addf %12, %11 : vector<1x96xf32>
    %14 = arith.divf %12, %13 : vector<1x96xf32>
    %15 = vector.extract_strided_slice %14 {offsets = [0, 0], sizes = [1, 32], strides = [1, 1]} : vector<1x96xf32> to vector<1x32xf32>
    %16 = vector.extract_strided_slice %14 {offsets = [0, 32], sizes = [1, 32], strides = [1, 1]} : vector<1x96xf32> to vector<1x32xf32>
    %17 = vector.extract_strided_slice %14 {offsets = [0, 64], sizes = [1, 32], strides = [1, 1]} : vector<1x96xf32> to vector<1x32xf32>
    %18 = vector.extract_strided_slice %8 {offsets = [0, 96], sizes = [1, 32], strides = [1, 1]} : vector<1x128xf32> to vector<1x32xf32>
    %19 = math.tanh %18 : vector<1x32xf32>
    %c0_10 = arith.constant 0 : index
    %c0_11 = arith.constant 0 : index
    %20 = vector.load %arg2[%c0_10, %c0_11] : memref<1x32xf32, #tpu.memory_space<vmem>>, vector<1x32xf32>
    %21 = arith.mulf %16, %20 : vector<1x32xf32>
    %22 = arith.mulf %15, %19 : vector<1x32xf32>
    %23 = arith.addf %21, %22 : vector<1x32xf32>
    %24 = math.tanh %23 : vector<1x32xf32>
    %25 = arith.mulf %17, %24 : vector<1x32xf32>
    %26 = tpu.concatenate %25, %23 in 1 : vector<1x32xf32>, vector<1x32xf32> -> vector<1x64xf32>
    %c0_12 = arith.constant 0 : index
    %c0_13 = arith.constant 0 : index
    %27 = vector.load %arg5[%c0_12, %c0_13] : memref<1x64xf32, #tpu.memory_space<vmem>>, vector<1x64xf32>
    tpu.vector_store %arg5[%c0_12, %c0_13], %26 {strides = array<i32>} : memref<1x64xf32, #tpu.memory_space<vmem>>, vector<1x64xf32>,
    return
  }
}

</mosaic_0001>

<llo_original>
// kernel: tpu_custom_call.1
$region0: #{tpu_custom_call.1}
  #allocation0 [shape = 'u32[]', space=smem, size = 0x4, offset = 0x4, fixed_abs, tag = 'smem constant byte address 0x4 - core index']
  #allocation1 [shape = 'u32[144,128]{1,0:T(1,128)}', space=vmem, size = 0x12000, scoped, tag = 'internal scratch']
  %s0 = inlined_call_operand.hbm [shape: f32[1,32], index: 0, kind: input, shape index: {}]
  %s1 = inlined_call_operand.vmem [shape: f32[1,32], index: 1, kind: input, shape index: {}]
  %s2 = inlined_call_operand.vmem [shape: f32[1,32], index: 2, kind: input, shape index: {}]
  %s3 = inlined_call_operand.hbm [shape: f32[64,128], index: 3, kind: input, shape index: {}]
  %s4 = inlined_call_operand.vmem [shape: f32[1,128], index: 4, kind: input, shape index: {}]
  %s5 = inlined_call_operand.hbm [shape: f32[1,64], index: 5, kind: output, shape index: {}]
  %s6 = sld [smem:[#allocation0]]
  $region38: #{tpu_custom_call.1} parent=0
    _
  %s8 = ssub.s32 1, %s6
  %s9 = scalar_select 0, %s8, %s6
  $region1: #{tpu_custom_call.1} parent=0
    #allocation2 [shape = 'u8[512]{0}', space=vmem, size = 0x400, scoped, tag = 'input window, operand 0, single buffered']
    #allocation3 [shape = 's32[1]{0}', space=sflag, size = 0x4, scoped, tag = 'scoped memory for tpu_custom_call.1']
    #allocation4 [shape = 's32[1]{0}', space=sflag, size = 0x4, scoped, tag = 'scoped memory for tpu_custom_call.1']
    #allocation5 [shape = 'u8[32768]{0}', space=vmem, size = 0x8000, scoped, tag = 'input window, operand 3, single buffered']
    #allocation6 [shape = 's32[1]{0}', space=sflag, size = 0x4, scoped, tag = 'scoped memory for tpu_custom_call.1']
    #allocation7 [shape = 'u8[512]{0}', space=vmem, size = 0x400, scoped, tag = 'output window, operand 0, single buffered']
    %10 = vsyncpa [#allocation3], 0
    %11 = vsyncpa [#allocation6], 0
    %12 = vsyncpa [#allocation4], 0
    // Predicated region
    $region2: #{tpu_custom_call.1} parent=1 // pred_check
      _
    $region3: #{tpu_custom_call.1} parent=1 // pred_check_branch
      %14 = sbr.rel (0) target = $region5
    $region4: #{tpu_custom_call.1} parent=1 // pred_region
      %s16 = ssub.s32 16, 16
      %17 = vsyncadd [#allocation3], %s16
      %s19 = sshll.u32 [#allocation2], 4
      %s20 = int_to_ptr.vmem [resolvable:$true] %s19
      %22 = dma.hbm_to_vmem [thread:$0]  %s0, 16, %s20, [#allocation3]
    $region5: #{tpu_custom_call.1} parent=1 // pred_fallthru
      _
    // Predicated region
    $region6: #{tpu_custom_call.1} parent=1 // pred_check
      _
    $region7: #{tpu_custom_call.1} parent=1 // pred_check_branch
      %24 = sbr.rel (0) target = $region9
    $region8: #{tpu_custom_call.1} parent=1 // pred_region
      _
    $region9: #{tpu_custom_call.1} parent=1 // pred_fallthru
      _
    // Predicated region
    $region10: #{tpu_custom_call.1} parent=1 // pred_check
      _
    $region11: #{tpu_custom_call.1} parent=1 // pred_check_branch
      %26 = sbr.rel (0) target = $region13
    $region12: #{tpu_custom_call.1} parent=1 // pred_region
      _
    $region13: #{tpu_custom_call.1} parent=1 // pred_fallthru
      _
    // Predicated region
    $region14: #{tpu_custom_call.1} parent=1 // pred_check
      _
    $region15: #{tpu_custom_call.1} parent=1 // pred_check_branch
      %28 = sbr.rel (0) target = $region17
    $region16: #{tpu_custom_call.1} parent=1 // pred_region
      %s30 = ssub.s32 1024, 1024
      %31 = vsyncadd [#allocation6], %s30
      %s32 = sshll.u32 [#allocation5], 4
      %s33 = int_to_ptr.vmem [resolvable:$true] %s32
      %38 = dma.hbm_to_vmem [thread:$0]  %s3, 1024, %s33, [#allocation6], 128, 128, 8
    $region17: #{tpu_custom_call.1} parent=1 // pred_fallthru
      _
    // Predicated region
    $region18: #{tpu_custom_call.1} parent=1 // pred_check
      _
    $region19: #{tpu_custom_call.1} parent=1 // pred_check_branch
      %40 = sbr.rel (0) target = $region21
    $region20: #{tpu_custom_call.1} parent=1 // pred_region
      _
    $region21: #{tpu_custom_call.1} parent=1 // pred_fallthru
      _
    // Predicated region
    $region22: #{tpu_custom_call.1} parent=1 // pred_check
      _
    $region23: #{tpu_custom_call.1} parent=1 // pred_check_branch
      %42 = sbr.rel (0) target = $region25
    $region24: #{tpu_custom_call.1} parent=1 // pred_region
      %43 = dma.done [#allocation3], 16
    $region25: #{tpu_custom_call.1} parent=1 // pred_fallthru
      _
    // Predicated region
    $region26: #{tpu_custom_call.1} parent=1 // pred_check
      _
    $region27: #{tpu_custom_call.1} parent=1 // pred_check_branch
      %45 = sbr.rel (0) target = $region29
    $region28: #{tpu_custom_call.1} parent=1 // pred_region
      %46 = dma.done [#allocation6], 1024
    $region29: #{tpu_custom_call.1} parent=1 // pred_fallthru
      _
    %v47 = vld [vmem:[#allocation2] sm:$0x1]
    %v48 = vld [vmem:[#allocation5] sm:$0xff]
    %v49 = vld [vmem:[#allocation5 + $0x8] sm:$0xff]
    %v50 = vld [vmem:[#allocation5 + $0x10] sm:$0xff]
    %v51 = vld [vmem:[#allocation5 + $0x18] sm:$0xff]
    %v52 = vld [vmem:[%s1] sm:$0x1]
    %v53 = vld [vmem:[#allocation5 + $0x20] sm:$0xff]
    %v54 = vld [vmem:[#allocation5 + $0x28] sm:$0xff]
    %v55 = vld [vmem:[#allocation5 + $0x30] sm:$0xff]
    %v56 = vld [vmem:[#allocation5 + $0x38] sm:$0xff]
    %vm57 = vcmask 261120
    %v59 = vsel %vm57, %v52, 0
    %61 = vmatprep.subr.mxu0 0.0
    %62 = vmatpush1.msra.mxu0 %v53
    %63 = vmatprep.subr.mxu0 0.0
    %64 = vmatpush1.msra.mxu0 %v54
    %65 = vmatprep.subr.mxu0 0.0
    %66 = vmatpush1.msra.mxu0 %v55
    %67 = vmatprep.subr.mxu0 0.0
    %68 = vmatpush1.msra.mxu0 %v56
    %69 = vmatprep.subr.mxu0 0.0
    %70 = vmatpush1.msra.mxu0 0.0
    %71 = vmatprep.subr.mxu0 0.0
    %72 = vmatpush1.msra.mxu0 0.0
    %73 = vmatprep.subr.mxu0 0.0
    %74 = vmatpush1.msra.mxu0 0.0
    %75 = vmatprep.subr.mxu0 0.0
    %76 = vmatpush1.msra.mxu0 0.0
    %77 = vmatprep.subr.mxu0 0.0
    %78 = vmatpush1.msra.mxu0 0.0
    %79 = vmatprep.subr.mxu0 0.0
    %80 = vmatpush1.msra.mxu0 0.0
    %81 = vmatprep.subr.mxu0 0.0
    %82 = vmatpush1.msra.mxu0 0.0
    %83 = vmatprep.subr.mxu0 0.0
    %84 = vmatpush1.msra.mxu0 0.0
    %85 = vmatprep.subr.mxu0 0.0
    %86 = vmatpush1.msra.mxu0 0.0
    %87 = vmatprep.subr.mxu0 0.0
    %88 = vmatpush1.msra.mxu0 0.0
    %89 = vmatprep.subr.mxu0 0.0
    %90 = vmatpush1.msra.mxu0 0.0
    %91 = vmatprep.subr.mxu0 0.0
    %92 = vmatpush1.msra.mxu0 0.0
    %93 = vmatprep.subr.mxu0 0.0
    %94 = vmatpush1.msra.mxu0 0.0
    %95 = vmatprep.subr.mxu0 0.0
    %96 = vmatpush1.msra.mxu0 0.0
    %97 = vmatprep.subr.mxu0 0.0
    %98 = vmatpush1.msra.mxu0 0.0
    %99 = vmatprep.subr.mxu0 0.0
    %100 = vmatpush1.msra.mxu0 0.0
    %101 = vmatprep.subr.mxu0 0.0
    %102 = vmatpush1.msra.mxu0 0.0
    %103 = vmatprep.subr.mxu0 0.0
    %104 = vmatpush1.msra.mxu0 0.0
    %105 = vmatprep.subr.mxu0 0.0
    %106 = vmatpush1.msra.mxu0 0.0
    %107 = vmatprep.subr.mxu0 0.0
    %108 = vmatpush1.msra.mxu0 0.0
    %109 = vmatprep.subr.mxu0 0.0
    %110 = vmatpush1.msra.mxu0 0.0
    %111 = vmatprep.subr.mxu0 0.0
    %112 = vmatpush1.msra.mxu0 0.0
    %113 = vmatprep.subr.mxu0 0.0
    %114 = vmatpush1.msra.mxu0 0.0
    %115 = vmatprep.subr.mxu0 0.0
    %116 = vmatpush1.msra.mxu0 0.0
    %117 = vmatprep.subr.mxu0 0.0
    %118 = vmatpush1.msra.mxu0 0.0
    %119 = vmatprep.subr.mxu0 0.0
    %120 = vmatpush1.msra.mxu0 0.0
    %121 = vmatprep.subr.mxu0 0.0
    %122 = vmatpush1.msra.mxu0 0.0
    %123 = vmatprep.subr.mxu0 0.0
    %124 = vmatpush1.msra.mxu0 0.0
    %125 = vmatprep.mubr.f32.mxu0 0.0
    %126 = vmatmul.mubr.f32.gmra.mrb[0].mxu0 %v59
    %v127 = vpop.f32.mrb[0].mxu0
    %v128 = vadd.f32 0.0, %v127
    %v129 = vpop.f32.mrb[0].mxu0
    %130 = vdwg.mxu0
    %v132 = vsel %vm57, %v47, 0
    %134 = vmatprep.subr.mxu0 0.0
    %135 = vmatpush1.msra.mxu0 %v48
    %136 = vmatprep.subr.mxu0 0.0
    %137 = vmatpush1.msra.mxu0 %v49
    %138 = vmatprep.subr.mxu0 0.0
    %139 = vmatpush1.msra.mxu0 %v50
    %140 = vmatprep.subr.mxu0 0.0
    %141 = vmatpush1.msra.mxu0 %v51
    %142 = vmatprep.subr.mxu0 0.0
    %143 = vmatpush1.msra.mxu0 0.0
    %144 = vmatprep.subr.mxu0 0.0
    %145 = vmatpush1.msra.mxu0 0.0
    %146 = vmatprep.subr.mxu0 0.0
    %147 = vmatpush1.msra.mxu0 0.0
    %148 = vmatprep.subr.mxu0 0.0
    %149 = vmatpush1.msra.mxu0 0.0
    %150 = vmatprep.subr.mxu0 0.0
    %151 = vmatpush1.msra.mxu0 0.0
    %152 = vmatprep.subr.mxu0 0.0
    %153 = vmatpush1.msra.mxu0 0.0
    %154 = vmatprep.subr.mxu0 0.0
    %155 = vmatpush1.msra.mxu0 0.0
    %156 = vmatprep.subr.mxu0 0.0
    %157 = vmatpush1.msra.mxu0 0.0
    %158 = vmatprep.subr.mxu0 0.0
    %159 = vmatpush1.msra.mxu0 0.0
    %160 = vmatprep.subr.mxu0 0.0
    %161 = vmatpush1.msra.mxu0 0.0
    %162 = vmatprep.subr.mxu0 0.0
    %163 = vmatpush1.msra.mxu0 0.0
    %164 = vmatprep.subr.mxu0 0.0
    %165 = vmatpush1.msra.mxu0 0.0
    %166 = vmatprep.subr.mxu0 0.0
    %167 = vmatpush1.msra.mxu0 0.0
    %168 = vmatprep.subr.mxu0 0.0
    %169 = vmatpush1.msra.mxu0 0.0
    %170 = vmatprep.subr.mxu0 0.0
    %171 = vmatpush1.msra.mxu0 0.0
    %172 = vmatprep.subr.mxu0 0.0
    %173 = vmatpush1.msra.mxu0 0.0
    %174 = vmatprep.subr.mxu0 0.0
    %175 = vmatpush1.msra.mxu0 0.0
    %176 = vmatprep.subr.mxu0 0.0
    %177 = vmatpush1.msra.mxu0 0.0
    %178 = vmatprep.subr.mxu0 0.0
    %179 = vmatpush1.msra.mxu0 0.0
    %180 = vmatprep.subr.mxu0 0.0
    %181 = vmatpush1.msra.mxu0 0.0
    %182 = vmatprep.subr.mxu0 0.0
    %183 = vmatpush1.msra.mxu0 0.0
    %184 = vmatprep.subr.mxu0 0.0
    %185 = vmatpush1.msra.mxu0 0.0
    %186 = vmatprep.subr.mxu0 0.0
    %187 = vmatpush1.msra.mxu0 0.0
    %188 = vmatprep.subr.mxu0 0.0
    %189 = vmatpush1.msra.mxu0 0.0
    %190 = vmatprep.subr.mxu0 0.0
    %191 = vmatpush1.msra.mxu0 0.0
    %192 = vmatprep.subr.mxu0 0.0
    %193 = vmatpush1.msra.mxu0 0.0
    %194 = vmatprep.subr.mxu0 0.0
    %195 = vmatpush1.msra.mxu0 0.0
    %196 = vmatprep.subr.mxu0 0.0
    %197 = vmatpush1.msra.mxu0 0.0
    %198 = vmatprep.mubr.f32.mxu0 0.0
    %199 = vmatmul.mubr.f32.gmra.mrb[0].mxu0 %v132
    %v200 = vpop.f32.mrb[0].mxu0
    %v201 = vadd.f32 %v128, %v200
    %v202 = vpop.f32.mrb[0].mxu0
    %203 = vdwg.mxu0
    %v204 = vld [vmem:[%s4] sm:$0x1]
    %v205 = vadd.f32 %v201, %v204
    %v206 = vxor.u32 %v205, 2147483648
    %v207 = vmul.f32 %v206, 1.442695
    %v208 = vpow.pop %v207
    %v209 = vadd.f32 %v208, 1.0
    %v210 = vrcp.pop %v209
    %v211 = vmul.f32 1.0, %v210
    %v212 = vtanh.pop %v205
    %v213 = vld [vmem:[%s2] sm:$0x1]
    %v215 = vlaneseq
    %v216 = vshrl.u32 %v215, 7
    %v217 = vsub.s32 0, %v216
    %v218 = vrot.slane %v213, %v217
    %219 = vrot.lane.b32.xlu0 %v218, 32
    %v220 = vpop.permute.xlu0 %219
    %v222 = vmul.f32 %v211, %v220
    %224 = vrot.lane.b32.xlu0 %v212, 32
    %v225 = vpop.permute.xlu0 %224
    %v227 = vmul.f32 %v211, %v225
    %229 = vrot.lane.b32.xlu0 %v227, 32
    %v230 = vpop.permute.xlu0 %229
    %v232 = vadd.f32 %v222, %v230
    %v233 = vtanh.pop %v232
    %235 = vrot.lane.b32.xlu0 %v233, 32
    %v236 = vpop.permute.xlu0 %235
    %v238 = vmul.f32 %v211, %v236
    %240 = vrot.lane.b32.xlu0 %v238, 64
    %v241 = vpop.permute.xlu0 %240
    %v243 = vsel %vm57, %v241, %v232
    %vm244 = vcmask 516096
    %245 = vst.msk [vmem:[#allocation7] sm:$0x1] %vm244, %v243
    // Predicated region
    $region30: #{tpu_custom_call.1} parent=1 // pred_check
      _
    $region31: #{tpu_custom_call.1} parent=1 // pred_check_branch
      %247 = sbr.rel (0) target = $region33
    $region32: #{tpu_custom_call.1} parent=1 // pred_region
      %s249 = ssub.s32 16, 16
      %250 = vsyncadd [#allocation4], %s249
      %s252 = sshll.u32 [#allocation7], 4
      %s253 = int_to_ptr.vmem [resolvable:$true] %s252
      %255 = dma.vmem_to_hbm [thread:$0]  %s253, 16, %s5, [#allocation4]
    $region33: #{tpu_custom_call.1} parent=1 // pred_fallthru
      _
    // Predicated region
    $region34: #{tpu_custom_call.1} parent=1 // pred_check
      _
    $region35: #{tpu_custom_call.1} parent=1 // pred_check_branch
      %257 = sbr.rel (0) target = $region37
    $region36: #{tpu_custom_call.1} parent=1 // pred_region
      %258 = dma.done [#allocation4], 16
    $region37: #{tpu_custom_call.1} parent=1 // pred_fallthru
      _
    %259 = vsyncpa [#allocation3], 1
    %260 = vsyncpa [#allocation6], 1
    %261 = vsyncpa [#allocation4], 1

</llo_original>
